<compile_context>
chip_gen: v6e
topology: v6e:2x2x1
jax: 0.10.0
libtpu: 0.0.40
codegen_flags: <defaults>
</compile_context>

<pallas_src>
import jax
import jax.numpy as jnp
from jax.experimental import pallas as pl
from jax.experimental.pallas import tpu as pltpu

_LANES = 128
_SUBLANES = 8
_MAX_BLOCK_BYTES = 4 * 1024 * 1024      # per input, per pipeline buffer
_SPLIT_MIN_ROWS = 512                   # engage the 2-way TC split above this many rows
_VMEM_LIMIT_BYTES = 32 * 1024 * 1024    # 2 inputs x 2 buffers x 4 MiB = 16 MiB + headroom


def _cdiv(a, b):
    return -(-a // b)


def _round_up(x, m):
    return _cdiv(x, m) * m


def _make_kernel(block_rows, sub, tiles_per_split, rows_total, needs_mask):
    def kernel(p_ref, t_ref, out_ref, acc_ref):
        step = pl.program_id(1)          # reduction axis ("arbitrary")

        @pl.when(step == 0)
        def _():
            acc_ref[...] = jnp.zeros_like(acc_ref)

        # SmoothL1 with beta = 1.0 (PyTorch default), branch-free form:
        #   c = min(|d|, 1) ;  loss = c * (|d| - 0.5 * c)
        #   |d| < 1  -> 0.5 * d^2 ;  else -> |d| - 0.5
        d = p_ref[...].astype(jnp.float32) - t_ref[...].astype(jnp.float32)
        a = jnp.abs(d)
        c = jnp.minimum(a, 1.0)
        loss = c * (a - 0.5 * c)

        if needs_mask:
            # Logical (unclamped) start row of this block.  Rows whose global index is
            # >= rows_total are DMA padding of the partial trailing block or a clamped
            # duplicate block -> force their contribution to 0.
            start = (pl.program_id(0) * tiles_per_split + step) * block_rows
            rem = rows_total - start                       # scalar (may be <= 0)
            local_row = jax.lax.broadcasted_iota(jnp.int32, (block_rows, _LANES), 0)
            loss = jnp.where(local_row < rem, loss, 0.0)

        # vreg-shaped accumulation: reduce only over the leading (sublane-group) axis on
        # the VPU; the cross-lane reduce is deferred to the wrapper.
        acc_ref[...] += jnp.sum(loss.reshape(-1, sub, _LANES), axis=0)

        @pl.when(step == pl.num_programs(1) - 1)
        def _():
            out_ref[...] = acc_ref[...]                    # lane-dense partial per split

    return kernel


def bbox_regression_loss(pred_boxes, target_boxes):
    """SmoothL1Loss(reduction='sum')(pred.view(-1,4), target.view(-1,4))."""
    p = jnp.ravel(pred_boxes)
    t = jnp.ravel(target_boxes)
    assert p.shape == t.shape, (p.shape, t.shape)

    n = p.shape[0]
    if n == 0:
        return jnp.zeros((), jnp.float32)

    # Zero-copy reshape to (rows, 128) when possible.  Only element counts that are not
    # a multiple of 128 take the small pad-to-lane fallback (a copy, correctness only).
    if n % _LANES != 0:
        pad = _LANES - n % _LANES
        p = jnp.pad(p, (0, pad))
        t = jnp.pad(t, (0, pad))
        n = n + pad
    rows = n // _LANES
    p2 = p.reshape(rows, _LANES)
    t2 = t.reshape(rows, _LANES)

    itemsize = jnp.dtype(p.dtype).itemsize
    max_block_rows = max(
        _SUBLANES, (_MAX_BLOCK_BYTES // (itemsize * _LANES)) // _SUBLANES * _SUBLANES
    )

    # 2-way TensorCore split for medium/large inputs (v7x megacore); serial elsewhere.
    num_splits = 2 if rows >= _SPLIT_MIN_ROWS else 1
    rows_per_split = _cdiv(rows, num_splits)

    if rows < _SUBLANES:
        block_rows = rows          # block == full array dims (allowed below (8,128))
        sub = rows
    else:
        block_rows = min(
            max_block_rows,
            _round_up(rows_per_split, _SUBLANES),
            (rows // _SUBLANES) * _SUBLANES,   # never exceed the array's row extent
        )
        sub = _SUBLANES

    tiles_per_split = _cdiv(rows_per_split, block_rows)
    total_tiles = num_splits * tiles_per_split
    needs_mask = total_tiles * block_rows != rows
    last_block = _cdiv(rows, block_rows) - 1

    def in_map(c, i):
        b = c * tiles_per_split + i
        if needs_mask:
            # Keep every DMA in range; duplicated reads are fully masked in the kernel.
            b = jnp.minimum(b, last_block)
        return (b, 0)

    kernel = _make_kernel(block_rows, sub, tiles_per_split, rows, needs_mask)

    partials = pl.pallas_call(
        kernel,
        out_shape=jax.ShapeDtypeStruct((num_splits * sub, _LANES), jnp.float32),
        grid_spec=pltpu.PrefetchScalarGridSpec(
            num_scalar_prefetch=0,
            grid=(num_splits, tiles_per_split),
            in_specs=[
                pl.BlockSpec((block_rows, _LANES), in_map),
                pl.BlockSpec((block_rows, _LANES), in_map),
            ],
            out_specs=pl.BlockSpec((sub, _LANES), lambda c, i: (c, 0)),
            scratch_shapes=[pltpu.VMEM((sub, _LANES), jnp.float32)],
        ),
        compiler_params=pltpu.CompilerParams(
            dimension_semantics=("parallel", "arbitrary"),
            vmem_limit_bytes=_VMEM_LIMIT_BYTES,
        ),
    )(p2, t2)
    return jnp.sum(partials)


def _reference(pred_boxes, target_boxes):
    d = pred_boxes.reshape(-1, 4).astype(jnp.float32) - target_boxes.reshape(
        -1, 4
    ).astype(jnp.float32)
    ad = jnp.abs(d)
    return jnp.sum(jnp.where(ad < 1.0, 0.5 * d * d, ad - 0.5))


if __name__ == "__main__":
    key = jax.random.PRNGKey(0)
    ks = jax.random.split(key, 10)

    # small: batch of 2 images, 16 boxes each, 4 coords -> 128 elements
    pred = jax.random.normal(ks[0], (2, 16, 4), jnp.float32) * 3.0
    targ = jax.random.normal(ks[1], (2, 16, 4), jnp.float32) * 3.0
    out = jax.block_until_ready(bbox_regression_loss(pred, targ))
    ref = _reference(pred, targ)
    assert jnp.allclose(out, ref, rtol=1e-5, atol=1e-5), (out, ref)

    # unaligned: 30 boxes -> 120 elements (exercises the lane-pad fallback)
    pred = jax.random.normal(ks[2], (3, 10, 4), jnp.float32) * 3.0
    targ = jax.random.normal(ks[3], (3, 10, 4), jnp.float32) * 3.0
    out = jax.block_until_ready(bbox_regression_loss(pred, targ))
    ref = _reference(pred, targ)
    assert jnp.allclose(out, ref, rtol=1e-5, atol=1e-5), (out, ref)

    # bf16 inputs: in-kernel upcast path
    pred = (jax.random.normal(ks[4], (2, 512, 4), jnp.float32) * 3.0).astype(jnp.bfloat16)
    targ = (jax.random.normal(ks[5], (2, 512, 4), jnp.float32) * 3.0).astype(jnp.bfloat16)
    out = jax.block_until_ready(bbox_regression_loss(pred, targ))
    ref = _reference(pred, targ)
    assert jnp.allclose(out, ref, rtol=1e-5), (out, ref)

    # medium: 2500 rows -> 2-way split, one block per split, masked partial tail
    pred = jax.random.normal(ks[6], (2, 40000, 4), jnp.float32) * 3.0
    targ = jax.random.normal(ks[7], (2, 40000, 4), jnp.float32) * 3.0
    out = jax.block_until_ready(bbox_regression_loss(pred, targ))
    ref = _reference(pred, targ)
    assert jnp.allclose(out, ref, rtol=1e-4), (out, ref)

    # larger: 18750 rows -> multiple reduction steps per split + clamped duplicate block
    pred = jax.random.normal(ks[8], (1, 600000, 4), jnp.float32) * 3.0
    targ = jax.random.normal(ks[9], (1, 600000, 4), jnp.float32) * 3.0
    out = jax.block_until_ready(bbox_regression_loss(pred, targ))
    ref = _reference(pred, targ)
    assert jnp.allclose(out, ref, rtol=1e-4), (out, ref)

    print("KERNEL_OK")
</pallas_src>

<mosaic_0001>
module attributes {stable_mosaic.version = 11 : i64} {
  func.func @kernel(%arg0: i32, %arg1: i32, %arg2: memref<1x128xf32, #tpu.memory_space<vmem>>, %arg3: memref<1x128xf32, #tpu.memory_space<vmem>>, %arg4: memref<1x128xf32, #tpu.memory_space<vmem>>, %arg5: memref<1x128xf32, #tpu.memory_space<vmem>>) attributes {dimension_semantics = [#tpu.dimension_semantics<parallel>, #tpu.dimension_semantics<arbitrary>], iteration_bounds = array<i64: 1, 1>, scalar_prefetch = 0 : i64, scratch_operands = 1 : i64, tpu.core_type = #tpu.core_type<tc>, window_params = [{transform_indices = @transform_0, window_bounds = array<i64: 1, 128>}, {transform_indices = @transform_1, window_bounds = array<i64: 1, 128>}, {transform_indices = @transform_2, window_bounds = array<i64: 1, 128>}]} {
    %c0_i32 = arith.constant 0 : i32
    %0 = arith.cmpi eq, %arg1, %c0_i32 : i32
    %1 = arith.extui %0 : i1 to i32
    %c0_i32_0 = arith.constant 0 : i32
    %2 = arith.cmpi ne, %1, %c0_i32_0 : i32
    scf.if %2 {
      %cst_12 = arith.constant 0.000000e+00 : f32
      %21 = vector.broadcast %cst_12 : f32 to vector<1x128xf32>
      %c0_13 = arith.constant 0 : index
      %c0_14 = arith.constant 0 : index
      %22 = vector.load %arg5[%c0_13, %c0_14] : memref<1x128xf32, #tpu.memory_space<vmem>>, vector<1x128xf32>
      tpu.vector_store %arg5[%c0_13, %c0_14], %21 {strides = array<i32>} : memref<1x128xf32, #tpu.memory_space<vmem>>, vector<1x128xf32>,
    } else {
    }
    %c0 = arith.constant 0 : index
    %c0_1 = arith.constant 0 : index
    %3 = vector.load %arg2[%c0, %c0_1] : memref<1x128xf32, #tpu.memory_space<vmem>>, vector<1x128xf32>
    %c0_2 = arith.constant 0 : index
    %c0_3 = arith.constant 0 : index
    %4 = vector.load %arg3[%c0_2, %c0_3] : memref<1x128xf32, #tpu.memory_space<vmem>>, vector<1x128xf32>
    %5 = arith.subf %3, %4 : vector<1x128xf32>
    %6 = math.absf %5 : vector<1x128xf32>
    %cst = arith.constant 1.000000e+00 : f32
    %7 = vector.broadcast %cst : f32 to vector<1x128xf32>
    %8 = arith.minimumf %6, %7 : vector<1x128xf32>
    %cst_4 = arith.constant 5.000000e-01 : f32
    %9 = vector.broadcast %cst_4 : f32 to vector<1x128xf32>
    %10 = arith.mulf %9, %8 : vector<1x128xf32>
    %11 = arith.subf %6, %10 : vector<1x128xf32>
    %12 = arith.mulf %8, %11 : vector<1x128xf32>
    %c0_5 = arith.constant 0 : index
    %c0_6 = arith.constant 0 : index
    %13 = vector.load %arg5[%c0_5, %c0_6] : memref<1x128xf32, #tpu.memory_space<vmem>>, vector<1x128xf32>
    %14 = vector.shape_cast %12 : vector<1x128xf32> to vector<1x1x128xf32>
    %cst_7 = arith.constant dense<0.000000e+00> : vector<1x128xf32>
    %15 = vector.multi_reduction <add>, %14, %cst_7 [0] : vector<1x1x128xf32> to vector<1x128xf32>
    %16 = arith.addf %13, %15 : vector<1x128xf32>
    %c0_8 = arith.constant 0 : index
    %c0_9 = arith.constant 0 : index
    %17 = vector.load %arg5[%c0_8, %c0_9] : memref<1x128xf32, #tpu.memory_space<vmem>>, vector<1x128xf32>
    tpu.vector_store %arg5[%c0_8, %c0_9], %16 {strides = array<i32>} : memref<1x128xf32, #tpu.memory_space<vmem>>, vector<1x128xf32>,
    %c0_i32_10 = arith.constant 0 : i32
    %18 = arith.cmpi eq, %arg1, %c0_i32_10 : i32
    %19 = arith.extui %18 : i1 to i32
    %c0_i32_11 = arith.constant 0 : i32
    %20 = arith.cmpi ne, %19, %c0_i32_11 : i32
    scf.if %20 {
      %c0_12 = arith.constant 0 : index
      %c0_13 = arith.constant 0 : index
      %21 = vector.load %arg5[%c0_12, %c0_13] : memref<1x128xf32, #tpu.memory_space<vmem>>, vector<1x128xf32>
      %c0_14 = arith.constant 0 : index
      %c0_15 = arith.constant 0 : index
      %22 = vector.load %arg4[%c0_14, %c0_15] : memref<1x128xf32, #tpu.memory_space<vmem>>, vector<1x128xf32>
      tpu.vector_store %arg4[%c0_14, %c0_15], %21 {strides = array<i32>} : memref<1x128xf32, #tpu.memory_space<vmem>>, vector<1x128xf32>,
    } else {
    }
    return
  }
  func.func @transform_0(%arg0: i32, %arg1: i32) -> (i32, i32) {
    %c1_i32 = arith.constant 1 : i32
    %0 = arith.muli %arg0, %c1_i32 : i32
    %1 = arith.addi %0, %arg1 : i32
    %c0_i32 = arith.constant 0 : i32
    %c0_i32_0 = arith.constant 0 : i32
    return %1, %c0_i32 : i32, i32
  }
  func.func @transform_1(%arg0: i32, %arg1: i32) -> (i32, i32) {
    %c1_i32 = arith.constant 1 : i32
    %0 = arith.muli %arg0, %c1_i32 : i32
    %1 = arith.addi %0, %arg1 : i32
    %c0_i32 = arith.constant 0 : i32
    %c0_i32_0 = arith.constant 0 : i32
    return %1, %c0_i32 : i32, i32
  }
  func.func @transform_2(%arg0: i32, %arg1: i32) -> (i32, i32) {
    %c0_i32 = arith.constant 0 : i32
    %c0_i32_0 = arith.constant 0 : i32
    return %arg0, %c0_i32 : i32, i32
  }
}

</mosaic_0001>

<llo_original>
// kernel: tpu_custom_call.1
$region0: #{tpu_custom_call.1}
  #allocation0 [shape = 'u32[]', space=smem, size = 0x4, offset = 0x4, fixed_abs, tag = 'smem constant byte address 0x4 - core index']
  #allocation1 [shape = 'u32[144,128]{1,0:T(1,128)}', space=vmem, size = 0x12000, scoped, tag = 'internal scratch']
  #allocation2 [shape = 'f32[1,128]{1,0:T(1,128)}', space=vmem, size = 0x200, scoped, tag = 'scratch operand']
  %s0 = inlined_call_operand.hbm [shape: f32[1,128], index: 0, kind: input, shape index: {}]
  %s1 = inlined_call_operand.vmem [shape: f32[1,128], index: 1, kind: input, shape index: {}]
  %s2 = inlined_call_operand.hbm [shape: f32[1,128], index: 2, kind: output, shape index: {}]
  %s3 = sld [smem:[#allocation0]]
  $region30: #{tpu_custom_call.1} parent=0
    _
  %s5 = ssub.s32 1, %s3
  %s6 = scalar_select 0, %s5, %s3
  $region1: #{tpu_custom_call.1} parent=0
    #allocation3 [shape = 'u8[512]{0}', space=vmem, size = 0x400, scoped, tag = 'input window, operand 0, single buffered']
    #allocation4 [shape = 's32[1]{0}', space=sflag, size = 0x4, scoped, tag = 'scoped memory for tpu_custom_call.1']
    #allocation5 [shape = 's32[1]{0}', space=sflag, size = 0x4, scoped, tag = 'scoped memory for tpu_custom_call.1']
    #allocation6 [shape = 'u8[512]{0}', space=vmem, size = 0x400, scoped, tag = 'output window, operand 0, single buffered']
    %7 = vsyncpa [#allocation4], 0
    %8 = vsyncpa [#allocation5], 0
    // Predicated region
    $region2: #{tpu_custom_call.1} parent=1 // pred_check
      _
    $region3: #{tpu_custom_call.1} parent=1 // pred_check_branch
      %10 = sbr.rel (0) target = $region5
    $region4: #{tpu_custom_call.1} parent=1 // pred_region
      %s11 = sadd.s32 0, 0
      %s13 = ssub.s32 16, 16
      %14 = vsyncadd [#allocation4], %s13
      %s15 = smul.addr %s11, 16
      %s16 = scalar_lea.hbm %s0, %s15
      %s18 = sshll.u32 [#allocation3], 4
      %s19 = int_to_ptr.vmem [resolvable:$true] %s18
      %21 = dma.hbm_to_vmem [thread:$0]  %s16, 16, %s19, [#allocation4]
    $region5: #{tpu_custom_call.1} parent=1 // pred_fallthru
      _
    // Predicated region
    $region6: #{tpu_custom_call.1} parent=1 // pred_check
      _
    $region7: #{tpu_custom_call.1} parent=1 // pred_check_branch
      %23 = sbr.rel (0) target = $region9
    $region8: #{tpu_custom_call.1} parent=1 // pred_region
      %s24 = sadd.s32 0, 0
      %p25 = scmp.lt.s32.totalorder %s24, 0
      %s26 = scalar_select %p25, %s24, 0
      %s27 = scalar_lea.vmem %s1, %s26
      %s28 = sadd.s32 0, 0
    $region9: #{tpu_custom_call.1} parent=1 // pred_fallthru
      _
    // Predicated region
    $region10: #{tpu_custom_call.1} parent=1 // pred_check
      _
    $region11: #{tpu_custom_call.1} parent=1 // pred_check_branch
      %30 = sbr.rel (0) target = $region13
    $region12: #{tpu_custom_call.1} parent=1 // pred_region
      %31 = dma.done [#allocation4], 16
    $region13: #{tpu_custom_call.1} parent=1 // pred_fallthru
      _
    %s32 = sadd.s32 0, 0
    %p33 = scmp.lt.s32.totalorder %s32, 0
    %s34 = scalar_select %p33, %s32, 0
    %s35 = scalar_lea.vmem %s1, %s34
    %s36 = sadd.s32 0, 0
    %s37 = sadd.s32 0, 0
    %p38 = scmp.lt.s32.totalorder %s37, 0
    %s39 = scalar_select %p38, %s37, 0
    %s40 = scalar_lea.vmem %s1, %s39
    %s41 = sadd.s32 0, 0
    %p42 = scmp.eq.s32.totalorder 0, 0
    // Predicated region
    $region14: #{tpu_custom_call.1} parent=1 // pred_check
      %p43 = pneg %p42
    $region15: #{tpu_custom_call.1} parent=1 // pred_check_branch
      %45 = sbr.rel (%p43) target = $region17
    $region16: #{tpu_custom_call.1} parent=1 // pred_region
      %46 = vst [vmem:[#allocation2] sm:$0x1] 0.0
    $region17: #{tpu_custom_call.1} parent=1 // pred_fallthru
      _
    %v47 = vld [vmem:[#allocation3] sm:$0x1]
    %v48 = vld [vmem:[%s40] sm:$0x1]
    %v49 = vsub.f32 %v47, %v48
    %v50 = vand.u32 2147483647, %v49
    %v51 = vmin.f32 %v50, 1.0
    %v52 = vmul.f32 %v51, 0.5
    %v53 = vsub.f32 %v50, %v52
    %v54 = vmul.f32 %v51, %v53
    %v55 = vld [vmem:[#allocation2] sm:$0x1]
    %v56 = vadd.f32 %v54, 0.0
    %v57 = vadd.f32 %v55, %v56
    %58 = vst [vmem:[#allocation2] sm:$0x1] %v57
    // Predicated region
    $region18: #{tpu_custom_call.1} parent=1 // pred_check
      %p59 = pneg %p42
    $region19: #{tpu_custom_call.1} parent=1 // pred_check_branch
      %61 = sbr.rel (%p59) target = $region21
    $region20: #{tpu_custom_call.1} parent=1 // pred_region
      %v62 = vld [vmem:[#allocation2] sm:$0x1]
      %63 = vst [vmem:[#allocation6] sm:$0x1] %v62
    $region21: #{tpu_custom_call.1} parent=1 // pred_fallthru
      _
    // Predicated region
    $region22: #{tpu_custom_call.1} parent=1 // pred_check
      _
    $region23: #{tpu_custom_call.1} parent=1 // pred_check_branch
      %65 = sbr.rel (0) target = $region25
    $region24: #{tpu_custom_call.1} parent=1 // pred_region
      %s67 = ssub.s32 16, 16
      %68 = vsyncadd [#allocation5], %s67
      %s70 = sshll.u32 [#allocation6], 4
      %s71 = int_to_ptr.vmem [resolvable:$true] %s70
      %73 = dma.vmem_to_hbm [thread:$0]  %s71, 16, %s2, [#allocation5]
    $region25: #{tpu_custom_call.1} parent=1 // pred_fallthru
      _
    // Predicated region
    $region26: #{tpu_custom_call.1} parent=1 // pred_check
      _
    $region27: #{tpu_custom_call.1} parent=1 // pred_check_branch
      %75 = sbr.rel (0) target = $region29
    $region28: #{tpu_custom_call.1} parent=1 // pred_region
      %76 = dma.done [#allocation5], 16
    $region29: #{tpu_custom_call.1} parent=1 // pred_fallthru
      _
    %77 = vsyncpa [#allocation4], 1
    %78 = vsyncpa [#allocation5], 1

</llo_original>
